<compile_context>
chip_gen: v6e
topology: v6e:2x2x1
jax: 0.10.0
libtpu: 0.0.40
codegen_flags: <defaults>
</compile_context>

<pallas_src>
import math
import functools

import jax
import jax.numpy as jnp
from jax import lax
from jax.experimental import pallas as pl
from jax.experimental.pallas import tpu as pltpu

LANE = 128
SUB = 8
MIN_TILE = LANE * SUB  # 1024 batch elements = one (8,128) vreg per feature row


def _round_up(x, m):
    return ((x + m - 1) // m) * m


def mlp_tanh4_kernel(p_ref, x_ref, o_ref, *, dims, chunk_sublanes=SUB, unroll=2):
    """One batch tile of the full forward pass.

    p_ref : [n_params] f32 in SMEM  (per layer: W[out,in] row-major, then b[out])
    x_ref : [in_features, S, 128] f32 in VMEM  (batch folded onto sublane x lane)
    o_ref : [out_features, S, 128] f32 in VMEM
    """
    n_layers = len(dims) - 1
    in_features = dims[0]
    S = x_ref.shape[1]

    def layer_chain(rows):
        # rows: list of [chunk, 128] activation slabs (one per feature).
        off = 0
        for li in range(n_layers):
            fan_in, fan_out = dims[li], dims[li + 1]
            w_off = off
            b_off = off + fan_in * fan_out
            off = b_off + fan_out
            new_rows = []
            for j in range(fan_out):
                # z_j = b_j + sum_k W[j,k] * h_k  -- scalar-broadcast muls on the
                # VPU, combined with a tree-sum to halve dependency depth.
                terms = [rows[k] * p_ref[w_off + j * fan_in + k] for k in range(fan_in)]
                while len(terms) > 1:
                    nxt = [terms[t] + terms[t + 1] for t in range(0, len(terms) - 1, 2)]
                    if len(terms) % 2:
                        nxt.append(terms[-1])
                    terms = nxt
                acc = terms[0] + p_ref[b_off + j]
                if li < n_layers - 1:
                    acc = jnp.tanh(acc)  # EUP transcendental (hidden layers only)
                new_rows.append(acc)
            rows = new_rows
        return rows

    if S <= chunk_sublanes:
        # Small tile: one pass over the whole block (activations are <= 1 vreg each).
        rows = [x_ref[k] for k in range(in_features)]
        for j, r in enumerate(layer_chain(rows)):
            o_ref[j] = r.astype(o_ref.dtype)
    else:
        # Large tile: walk the batch-within-tile in 8-sublane chunks so the ~8
        # live activation slabs stay in vregs instead of VMEM temporaries.
        assert S % chunk_sublanes == 0, (S, chunk_sublanes)
        n_chunks = S // chunk_sublanes

        def body(c, carry):
            s0 = pl.multiple_of(c * chunk_sublanes, chunk_sublanes)
            rows = [x_ref[k, pl.ds(s0, chunk_sublanes), :] for k in range(in_features)]
            outs = layer_chain(rows)
            for j, r in enumerate(outs):
                o_ref[j, pl.ds(s0, chunk_sublanes), :] = r.astype(o_ref.dtype)
            return carry

        lax.fori_loop(0, n_chunks, body, 0, unroll=min(unroll, n_chunks))


def tanh_class4_forward(x, flat_params, dims, *, max_batch_tile=128 * 1024):
    """x: [B, in_features] f32. flat_params: 1-D f32 of all W/b, PyTorch layout."""
    B, in_features = x.shape
    assert in_features == dims[0]
    out_features = dims[-1]

    # --- tile selection -----------------------------------------------------
    b_pad = _round_up(max(B, 1), LANE)
    if b_pad <= MIN_TILE:
        batch_tile = b_pad                       # single small tile (S <= 8)
    else:
        b_pad = _round_up(b_pad, MIN_TILE)
        # >= 2 grid steps so both v7x TensorCores get work; cap tile size.
        n_tiles = max(2, pl.cdiv(b_pad, max_batch_tile))
        batch_tile = _round_up(pl.cdiv(b_pad, n_tiles), MIN_TILE)
        b_pad = _round_up(b_pad, batch_tile)

    s_total = b_pad // LANE
    s_tile = batch_tile // LANE
    grid = (b_pad // batch_tile,)

    # --- input layout: pad (fusion-friendly), feature-major, fold batch onto
    # (sublane, lane) via a free row-major reshape --------------------------
    x_pad = jnp.pad(x.astype(jnp.float32), ((0, b_pad - B), (0, 0)))
    x_t = x_pad.T.reshape(in_features, s_total, LANE)

    kernel = functools.partial(mlp_tanh4_kernel, dims=tuple(dims))

    # Double-buffered in/out blocks + slack; explicit so v5e's 16 MiB default
    # scoped VMEM is never the limiter if the tile is enlarged.
    vmem_need = 2 * (in_features + out_features) * batch_tile * 4 + (2 << 20)
    vmem_limit = max(vmem_need, 8 * 1024 * 1024)

    out_t = pl.pallas_call(
        kernel,
        out_shape=jax.ShapeDtypeStruct((out_features, s_total, LANE), jnp.float32),
        grid_spec=pltpu.PrefetchScalarGridSpec(
            num_scalar_prefetch=0,
            grid=grid,
            in_specs=[
                # Entire parameter vector as one flat 1-D SMEM buffer (~77 floats).
                pl.BlockSpec(memory_space=pltpu.MemorySpace.SMEM),
                # Activations: [F, s_tile, 128] lane+sublane-dense slab.
                pl.BlockSpec((in_features, s_tile, LANE), lambda i: (0, i, 0)),
            ],
            out_specs=pl.BlockSpec((out_features, s_tile, LANE), lambda i: (0, i, 0)),
        ),
        compiler_params=pltpu.CompilerParams(
            dimension_semantics=("parallel",),   # batch tiles shard across TCs
            vmem_limit_bytes=vmem_limit,
        ),
    )(flat_params.astype(jnp.float32), x_t)

    # out_features == 1 in the module, so this transpose is effectively a reshape.
    out = out_t.reshape(out_features, b_pad)[:, :B].T
    return out.astype(x.dtype)


def init_params(key, dims):
    """PyTorch nn.Linear-style init; returns per-layer (W[out,in], b[out]) and flat vec."""
    layers = []
    flat = []
    for li in range(len(dims) - 1):
        fan_in, fan_out = dims[li], dims[li + 1]
        bound = 1.0 / math.sqrt(fan_in)
        key, kw, kb = jax.random.split(key, 3)
        W = jax.random.uniform(kw, (fan_out, fan_in), jnp.float32,
                               minval=-bound, maxval=bound)
        b = jax.random.uniform(kb, (fan_out,), jnp.float32,
                               minval=-bound, maxval=bound)
        layers.append((W, b))
        flat.append(W.reshape(-1))
        flat.append(b)
    return layers, jnp.concatenate(flat)


def reference_forward(x, layers):
    """Pure-JAX reference of tanh_class4 forward (BN_model=None path)."""
    h = x
    n = len(layers)
    for li, (W, b) in enumerate(layers):
        h = jnp.dot(h, W.T, precision=jax.lax.Precision.HIGHEST) + b
        if li < n - 1:
            h = jnp.tanh(h)
    return h


# TODO(synk): BatchNorm1d branches (BN_model='pre'/'post') are unused in the
# BN_model=None forward path implemented here.

if __name__ == "__main__":
    key = jax.random.PRNGKey(0)
    key, kx1, kx2, kp = jax.random.split(key, 4)

    dims = (2, 4, 4, 4, 4, 1)   # in, h1..h4, out  (module defaults)
    layers, flat_params = init_params(kp, dims)

    # Small case: single tile, S <= 8 path.
    B1 = 64
    x1 = jax.random.normal(kx1, (B1, dims[0]), jnp.float32)
    out1 = jax.block_until_ready(tanh_class4_forward(x1, flat_params, dims))
    ref1 = reference_forward(x1, layers)
    assert out1.shape == (B1, dims[-1])
    assert jnp.allclose(out1, ref1, atol=1e-5, rtol=1e-5), \
        float(jnp.max(jnp.abs(out1 - ref1)))

    # Larger case: exercises the multi-tile grid + in-kernel chunk loop path.
    B2 = 8192
    x2 = jax.random.normal(kx2, (B2, dims[0]), jnp.float32)
    out2 = jax.block_until_ready(tanh_class4_forward(x2, flat_params, dims))
    ref2 = reference_forward(x2, layers)
    assert out2.shape == (B2, dims[-1])
    assert jnp.allclose(out2, ref2, atol=1e-5, rtol=1e-5), \
        float(jnp.max(jnp.abs(out2 - ref2)))

    print("KERNEL_OK")
</pallas_src>

<mosaic_0001>
module attributes {stable_mosaic.version = 11 : i64} {
  func.func @mlp_tanh4_kernel(%arg0: i32, %arg1: memref<77xf32, #tpu.memory_space<smem>>, %arg2: memref<2x1x128xf32, #tpu.memory_space<vmem>>, %arg3: memref<1x1x128xf32, #tpu.memory_space<vmem>>) attributes {dimension_semantics = [#tpu.dimension_semantics<parallel>], iteration_bounds = array<i64: 1>, scalar_prefetch = 0 : i64, scratch_operands = 0 : i64, tpu.core_type = #tpu.core_type<tc>, window_params = [{transform_indices = @transform_0, window_bounds = array<i64: 77>}, {transform_indices = @transform_1, window_bounds = array<i64: 2, 1, 128>}, {transform_indices = @transform_2, window_bounds = array<i64: 1, 1, 128>}]} {
    %c0 = arith.constant 0 : index
    %c0_0 = arith.constant 0 : index
    %c0_1 = arith.constant 0 : index
    %0 = vector.load %arg2[%c0, %c0_0, %c0_1] : memref<2x1x128xf32, #tpu.memory_space<vmem>>, vector<1x1x128xf32>
    %1 = vector.shape_cast %0 : vector<1x1x128xf32> to vector<1x128xf32>
    %c1 = arith.constant 1 : index
    %c0_2 = arith.constant 0 : index
    %c0_3 = arith.constant 0 : index
    %2 = vector.load %arg2[%c1, %c0_2, %c0_3] : memref<2x1x128xf32, #tpu.memory_space<vmem>>, vector<1x1x128xf32>
    %3 = vector.shape_cast %2 : vector<1x1x128xf32> to vector<1x128xf32>
    %c0_4 = arith.constant 0 : index
    %4 = memref.load %arg1[%c0_4] : memref<77xf32, #tpu.memory_space<smem>>
    %5 = vector.broadcast %4 : f32 to vector<1x128xf32>
    %6 = arith.mulf %1, %5 : vector<1x128xf32>
    %c1_5 = arith.constant 1 : index
    %7 = memref.load %arg1[%c1_5] : memref<77xf32, #tpu.memory_space<smem>>
    %8 = vector.broadcast %7 : f32 to vector<1x128xf32>
    %9 = arith.mulf %3, %8 : vector<1x128xf32>
    %10 = arith.addf %6, %9 : vector<1x128xf32>
    %c8 = arith.constant 8 : index
    %11 = memref.load %arg1[%c8] : memref<77xf32, #tpu.memory_space<smem>>
    %12 = vector.broadcast %11 : f32 to vector<1x128xf32>
    %13 = arith.addf %10, %12 : vector<1x128xf32>
    %14 = math.tanh %13 : vector<1x128xf32>
    %c2 = arith.constant 2 : index
    %15 = memref.load %arg1[%c2] : memref<77xf32, #tpu.memory_space<smem>>
    %16 = vector.broadcast %15 : f32 to vector<1x128xf32>
    %17 = arith.mulf %1, %16 : vector<1x128xf32>
    %c3 = arith.constant 3 : index
    %18 = memref.load %arg1[%c3] : memref<77xf32, #tpu.memory_space<smem>>
    %19 = vector.broadcast %18 : f32 to vector<1x128xf32>
    %20 = arith.mulf %3, %19 : vector<1x128xf32>
    %21 = arith.addf %17, %20 : vector<1x128xf32>
    %c9 = arith.constant 9 : index
    %22 = memref.load %arg1[%c9] : memref<77xf32, #tpu.memory_space<smem>>
    %23 = vector.broadcast %22 : f32 to vector<1x128xf32>
    %24 = arith.addf %21, %23 : vector<1x128xf32>
    %25 = math.tanh %24 : vector<1x128xf32>
    %c4 = arith.constant 4 : index
    %26 = memref.load %arg1[%c4] : memref<77xf32, #tpu.memory_space<smem>>
    %27 = vector.broadcast %26 : f32 to vector<1x128xf32>
    %28 = arith.mulf %1, %27 : vector<1x128xf32>
    %c5 = arith.constant 5 : index
    %29 = memref.load %arg1[%c5] : memref<77xf32, #tpu.memory_space<smem>>
    %30 = vector.broadcast %29 : f32 to vector<1x128xf32>
    %31 = arith.mulf %3, %30 : vector<1x128xf32>
    %32 = arith.addf %28, %31 : vector<1x128xf32>
    %c10 = arith.constant 10 : index
    %33 = memref.load %arg1[%c10] : memref<77xf32, #tpu.memory_space<smem>>
    %34 = vector.broadcast %33 : f32 to vector<1x128xf32>
    %35 = arith.addf %32, %34 : vector<1x128xf32>
    %36 = math.tanh %35 : vector<1x128xf32>
    %c6 = arith.constant 6 : index
    %37 = memref.load %arg1[%c6] : memref<77xf32, #tpu.memory_space<smem>>
    %38 = vector.broadcast %37 : f32 to vector<1x128xf32>
    %39 = arith.mulf %1, %38 : vector<1x128xf32>
    %c7 = arith.constant 7 : index
    %40 = memref.load %arg1[%c7] : memref<77xf32, #tpu.memory_space<smem>>
    %41 = vector.broadcast %40 : f32 to vector<1x128xf32>
    %42 = arith.mulf %3, %41 : vector<1x128xf32>
    %43 = arith.addf %39, %42 : vector<1x128xf32>
    %c11 = arith.constant 11 : index
    %44 = memref.load %arg1[%c11] : memref<77xf32, #tpu.memory_space<smem>>
    %45 = vector.broadcast %44 : f32 to vector<1x128xf32>
    %46 = arith.addf %43, %45 : vector<1x128xf32>
    %47 = math.tanh %46 : vector<1x128xf32>
    %c12 = arith.constant 12 : index
    %48 = memref.load %arg1[%c12] : memref<77xf32, #tpu.memory_space<smem>>
    %49 = vector.broadcast %48 : f32 to vector<1x128xf32>
    %50 = arith.mulf %14, %49 : vector<1x128xf32>
    %c13 = arith.constant 13 : index
    %51 = memref.load %arg1[%c13] : memref<77xf32, #tpu.memory_space<smem>>
    %52 = vector.broadcast %51 : f32 to vector<1x128xf32>
    %53 = arith.mulf %25, %52 : vector<1x128xf32>
    %c14 = arith.constant 14 : index
    %54 = memref.load %arg1[%c14] : memref<77xf32, #tpu.memory_space<smem>>
    %55 = vector.broadcast %54 : f32 to vector<1x128xf32>
    %56 = arith.mulf %36, %55 : vector<1x128xf32>
    %c15 = arith.constant 15 : index
    %57 = memref.load %arg1[%c15] : memref<77xf32, #tpu.memory_space<smem>>
    %58 = vector.broadcast %57 : f32 to vector<1x128xf32>
    %59 = arith.mulf %47, %58 : vector<1x128xf32>
    %60 = arith.addf %50, %53 : vector<1x128xf32>
    %61 = arith.addf %56, %59 : vector<1x128xf32>
    %62 = arith.addf %60, %61 : vector<1x128xf32>
    %c28 = arith.constant 28 : index
    %63 = memref.load %arg1[%c28] : memref<77xf32, #tpu.memory_space<smem>>
    %64 = vector.broadcast %63 : f32 to vector<1x128xf32>
    %65 = arith.addf %62, %64 : vector<1x128xf32>
    %66 = math.tanh %65 : vector<1x128xf32>
    %c16 = arith.constant 16 : index
    %67 = memref.load %arg1[%c16] : memref<77xf32, #tpu.memory_space<smem>>
    %68 = vector.broadcast %67 : f32 to vector<1x128xf32>
    %69 = arith.mulf %14, %68 : vector<1x128xf32>
    %c17 = arith.constant 17 : index
    %70 = memref.load %arg1[%c17] : memref<77xf32, #tpu.memory_space<smem>>
    %71 = vector.broadcast %70 : f32 to vector<1x128xf32>
    %72 = arith.mulf %25, %71 : vector<1x128xf32>
    %c18 = arith.constant 18 : index
    %73 = memref.load %arg1[%c18] : memref<77xf32, #tpu.memory_space<smem>>
    %74 = vector.broadcast %73 : f32 to vector<1x128xf32>
    %75 = arith.mulf %36, %74 : vector<1x128xf32>
    %c19 = arith.constant 19 : index
    %76 = memref.load %arg1[%c19] : memref<77xf32, #tpu.memory_space<smem>>
    %77 = vector.broadcast %76 : f32 to vector<1x128xf32>
    %78 = arith.mulf %47, %77 : vector<1x128xf32>
    %79 = arith.addf %69, %72 : vector<1x128xf32>
    %80 = arith.addf %75, %78 : vector<1x128xf32>
    %81 = arith.addf %79, %80 : vector<1x128xf32>
    %c29 = arith.constant 29 : index
    %82 = memref.load %arg1[%c29] : memref<77xf32, #tpu.memory_space<smem>>
    %83 = vector.broadcast %82 : f32 to vector<1x128xf32>
    %84 = arith.addf %81, %83 : vector<1x128xf32>
    %85 = math.tanh %84 : vector<1x128xf32>
    %c20 = arith.constant 20 : index
    %86 = memref.load %arg1[%c20] : memref<77xf32, #tpu.memory_space<smem>>
    %87 = vector.broadcast %86 : f32 to vector<1x128xf32>
    %88 = arith.mulf %14, %87 : vector<1x128xf32>
    %c21 = arith.constant 21 : index
    %89 = memref.load %arg1[%c21] : memref<77xf32, #tpu.memory_space<smem>>
    %90 = vector.broadcast %89 : f32 to vector<1x128xf32>
    %91 = arith.mulf %25, %90 : vector<1x128xf32>
    %c22 = arith.constant 22 : index
    %92 = memref.load %arg1[%c22] : memref<77xf32, #tpu.memory_space<smem>>
    %93 = vector.broadcast %92 : f32 to vector<1x128xf32>
    %94 = arith.mulf %36, %93 : vector<1x128xf32>
    %c23 = arith.constant 23 : index
    %95 = memref.load %arg1[%c23] : memref<77xf32, #tpu.memory_space<smem>>
    %96 = vector.broadcast %95 : f32 to vector<1x128xf32>
    %97 = arith.mulf %47, %96 : vector<1x128xf32>
    %98 = arith.addf %88, %91 : vector<1x128xf32>
    %99 = arith.addf %94, %97 : vector<1x128xf32>
    %100 = arith.addf %98, %99 : vector<1x128xf32>
    %c30 = arith.constant 30 : index
    %101 = memref.load %arg1[%c30] : memref<77xf32, #tpu.memory_space<smem>>
    %102 = vector.broadcast %101 : f32 to vector<1x128xf32>
    %103 = arith.addf %100, %102 : vector<1x128xf32>
    %104 = math.tanh %103 : vector<1x128xf32>
    %c24 = arith.constant 24 : index
    %105 = memref.load %arg1[%c24] : memref<77xf32, #tpu.memory_space<smem>>
    %106 = vector.broadcast %105 : f32 to vector<1x128xf32>
    %107 = arith.mulf %14, %106 : vector<1x128xf32>
    %c25 = arith.constant 25 : index
    %108 = memref.load %arg1[%c25] : memref<77xf32, #tpu.memory_space<smem>>
    %109 = vector.broadcast %108 : f32 to vector<1x128xf32>
    %110 = arith.mulf %25, %109 : vector<1x128xf32>
    %c26 = arith.constant 26 : index
    %111 = memref.load %arg1[%c26] : memref<77xf32, #tpu.memory_space<smem>>
    %112 = vector.broadcast %111 : f32 to vector<1x128xf32>
    %113 = arith.mulf %36, %112 : vector<1x128xf32>
    %c27 = arith.constant 27 : index
    %114 = memref.load %arg1[%c27] : memref<77xf32, #tpu.memory_space<smem>>
    %115 = vector.broadcast %114 : f32 to vector<1x128xf32>
    %116 = arith.mulf %47, %115 : vector<1x128xf32>
    %117 = arith.addf %107, %110 : vector<1x128xf32>
    %118 = arith.addf %113, %116 : vector<1x128xf32>
    %119 = arith.addf %117, %118 : vector<1x128xf32>
    %c31 = arith.constant 31 : index
    %120 = memref.load %arg1[%c31] : memref<77xf32, #tpu.memory_space<smem>>
    %121 = vector.broadcast %120 : f32 to vector<1x128xf32>
    %122 = arith.addf %119, %121 : vector<1x128xf32>
    %123 = math.tanh %122 : vector<1x128xf32>
    %c32 = arith.constant 32 : index
    %124 = memref.load %arg1[%c32] : memref<77xf32, #tpu.memory_space<smem>>
    %125 = vector.broadcast %124 : f32 to vector<1x128xf32>
    %126 = arith.mulf %66, %125 : vector<1x128xf32>
    %c33 = arith.constant 33 : index
    %127 = memref.load %arg1[%c33] : memref<77xf32, #tpu.memory_space<smem>>
    %128 = vector.broadcast %127 : f32 to vector<1x128xf32>
    %129 = arith.mulf %85, %128 : vector<1x128xf32>
    %c34 = arith.constant 34 : index
    %130 = memref.load %arg1[%c34] : memref<77xf32, #tpu.memory_space<smem>>
    %131 = vector.broadcast %130 : f32 to vector<1x128xf32>
    %132 = arith.mulf %104, %131 : vector<1x128xf32>
    %c35 = arith.constant 35 : index
    %133 = memref.load %arg1[%c35] : memref<77xf32, #tpu.memory_space<smem>>
    %134 = vector.broadcast %133 : f32 to vector<1x128xf32>
    %135 = arith.mulf %123, %134 : vector<1x128xf32>
    %136 = arith.addf %126, %129 : vector<1x128xf32>
    %137 = arith.addf %132, %135 : vector<1x128xf32>
    %138 = arith.addf %136, %137 : vector<1x128xf32>
    %c48 = arith.constant 48 : index
    %139 = memref.load %arg1[%c48] : memref<77xf32, #tpu.memory_space<smem>>
    %140 = vector.broadcast %139 : f32 to vector<1x128xf32>
    %141 = arith.addf %138, %140 : vector<1x128xf32>
    %142 = math.tanh %141 : vector<1x128xf32>
    %c36 = arith.constant 36 : index
    %143 = memref.load %arg1[%c36] : memref<77xf32, #tpu.memory_space<smem>>
    %144 = vector.broadcast %143 : f32 to vector<1x128xf32>
    %145 = arith.mulf %66, %144 : vector<1x128xf32>
    %c37 = arith.constant 37 : index
    %146 = memref.load %arg1[%c37] : memref<77xf32, #tpu.memory_space<smem>>
    %147 = vector.broadcast %146 : f32 to vector<1x128xf32>
    %148 = arith.mulf %85, %147 : vector<1x128xf32>
    %c38 = arith.constant 38 : index
    %149 = memref.load %arg1[%c38] : memref<77xf32, #tpu.memory_space<smem>>
    %150 = vector.broadcast %149 : f32 to vector<1x128xf32>
    %151 = arith.mulf %104, %150 : vector<1x128xf32>
    %c39 = arith.constant 39 : index
    %152 = memref.load %arg1[%c39] : memref<77xf32, #tpu.memory_space<smem>>
    %153 = vector.broadcast %152 : f32 to vector<1x128xf32>
    %154 = arith.mulf %123, %153 : vector<1x128xf32>
    %155 = arith.addf %145, %148 : vector<1x128xf32>
    %156 = arith.addf %151, %154 : vector<1x128xf32>
    %157 = arith.addf %155, %156 : vector<1x128xf32>
    %c49 = arith.constant 49 : index
    %158 = memref.load %arg1[%c49] : memref<77xf32, #tpu.memory_space<smem>>
    %159 = vector.broadcast %158 : f32 to vector<1x128xf32>
    %160 = arith.addf %157, %159 : vector<1x128xf32>
    %161 = math.tanh %160 : vector<1x128xf32>
    %c40 = arith.constant 40 : index
    %162 = memref.load %arg1[%c40] : memref<77xf32, #tpu.memory_space<smem>>
    %163 = vector.broadcast %162 : f32 to vector<1x128xf32>
    %164 = arith.mulf %66, %163 : vector<1x128xf32>
    %c41 = arith.constant 41 : index
    %165 = memref.load %arg1[%c41] : memref<77xf32, #tpu.memory_space<smem>>
    %166 = vector.broadcast %165 : f32 to vector<1x128xf32>
    %167 = arith.mulf %85, %166 : vector<1x128xf32>
    %c42 = arith.constant 42 : index
    %168 = memref.load %arg1[%c42] : memref<77xf32, #tpu.memory_space<smem>>
    %169 = vector.broadcast %168 : f32 to vector<1x128xf32>
    %170 = arith.mulf %104, %169 : vector<1x128xf32>
    %c43 = arith.constant 43 : index
    %171 = memref.load %arg1[%c43] : memref<77xf32, #tpu.memory_space<smem>>
    %172 = vector.broadcast %171 : f32 to vector<1x128xf32>
    %173 = arith.mulf %123, %172 : vector<1x128xf32>
    %174 = arith.addf %164, %167 : vector<1x128xf32>
    %175 = arith.addf %170, %173 : vector<1x128xf32>
    %176 = arith.addf %174, %175 : vector<1x128xf32>
    %c50 = arith.constant 50 : index
    %177 = memref.load %arg1[%c50] : memref<77xf32, #tpu.memory_space<smem>>
    %178 = vector.broadcast %177 : f32 to vector<1x128xf32>
    %179 = arith.addf %176, %178 : vector<1x128xf32>
    %180 = math.tanh %179 : vector<1x128xf32>
    %c44 = arith.constant 44 : index
    %181 = memref.load %arg1[%c44] : memref<77xf32, #tpu.memory_space<smem>>
    %182 = vector.broadcast %181 : f32 to vector<1x128xf32>
    %183 = arith.mulf %66, %182 : vector<1x128xf32>
    %c45 = arith.constant 45 : index
    %184 = memref.load %arg1[%c45] : memref<77xf32, #tpu.memory_space<smem>>
    %185 = vector.broadcast %184 : f32 to vector<1x128xf32>
    %186 = arith.mulf %85, %185 : vector<1x128xf32>
    %c46 = arith.constant 46 : index
    %187 = memref.load %arg1[%c46] : memref<77xf32, #tpu.memory_space<smem>>
    %188 = vector.broadcast %187 : f32 to vector<1x128xf32>
    %189 = arith.mulf %104, %188 : vector<1x128xf32>
    %c47 = arith.constant 47 : index
    %190 = memref.load %arg1[%c47] : memref<77xf32, #tpu.memory_space<smem>>
    %191 = vector.broadcast %190 : f32 to vector<1x128xf32>
    %192 = arith.mulf %123, %191 : vector<1x128xf32>
    %193 = arith.addf %183, %186 : vector<1x128xf32>
    %194 = arith.addf %189, %192 : vector<1x128xf32>
    %195 = arith.addf %193, %194 : vector<1x128xf32>
    %c51 = arith.constant 51 : index
    %196 = memref.load %arg1[%c51] : memref<77xf32, #tpu.memory_space<smem>>
    %197 = vector.broadcast %196 : f32 to vector<1x128xf32>
    %198 = arith.addf %195, %197 : vector<1x128xf32>
    %199 = math.tanh %198 : vector<1x128xf32>
    %c52 = arith.constant 52 : index
    %200 = memref.load %arg1[%c52] : memref<77xf32, #tpu.memory_space<smem>>
    %201 = vector.broadcast %200 : f32 to vector<1x128xf32>
    %202 = arith.mulf %142, %201 : vector<1x128xf32>
    %c53 = arith.constant 53 : index
    %203 = memref.load %arg1[%c53] : memref<77xf32, #tpu.memory_space<smem>>
    %204 = vector.broadcast %203 : f32 to vector<1x128xf32>
    %205 = arith.mulf %161, %204 : vector<1x128xf32>
    %c54 = arith.constant 54 : index
    %206 = memref.load %arg1[%c54] : memref<77xf32, #tpu.memory_space<smem>>
    %207 = vector.broadcast %206 : f32 to vector<1x128xf32>
    %208 = arith.mulf %180, %207 : vector<1x128xf32>
    %c55 = arith.constant 55 : index
    %209 = memref.load %arg1[%c55] : memref<77xf32, #tpu.memory_space<smem>>
    %210 = vector.broadcast %209 : f32 to vector<1x128xf32>
    %211 = arith.mulf %199, %210 : vector<1x128xf32>
    %212 = arith.addf %202, %205 : vector<1x128xf32>
    %213 = arith.addf %208, %211 : vector<1x128xf32>
    %214 = arith.addf %212, %213 : vector<1x128xf32>
    %c68 = arith.constant 68 : index
    %215 = memref.load %arg1[%c68] : memref<77xf32, #tpu.memory_space<smem>>
    %216 = vector.broadcast %215 : f32 to vector<1x128xf32>
    %217 = arith.addf %214, %216 : vector<1x128xf32>
    %218 = math.tanh %217 : vector<1x128xf32>
    %c56 = arith.constant 56 : index
    %219 = memref.load %arg1[%c56] : memref<77xf32, #tpu.memory_space<smem>>
    %220 = vector.broadcast %219 : f32 to vector<1x128xf32>
    %221 = arith.mulf %142, %220 : vector<1x128xf32>
    %c57 = arith.constant 57 : index
    %222 = memref.load %arg1[%c57] : memref<77xf32, #tpu.memory_space<smem>>
    %223 = vector.broadcast %222 : f32 to vector<1x128xf32>
    %224 = arith.mulf %161, %223 : vector<1x128xf32>
    %c58 = arith.constant 58 : index
    %225 = memref.load %arg1[%c58] : memref<77xf32, #tpu.memory_space<smem>>
    %226 = vector.broadcast %225 : f32 to vector<1x128xf32>
    %227 = arith.mulf %180, %226 : vector<1x128xf32>
    %c59 = arith.constant 59 : index
    %228 = memref.load %arg1[%c59] : memref<77xf32, #tpu.memory_space<smem>>
    %229 = vector.broadcast %228 : f32 to vector<1x128xf32>
    %230 = arith.mulf %199, %229 : vector<1x128xf32>
    %231 = arith.addf %221, %224 : vector<1x128xf32>
    %232 = arith.addf %227, %230 : vector<1x128xf32>
    %233 = arith.addf %231, %232 : vector<1x128xf32>
    %c69 = arith.constant 69 : index
    %234 = memref.load %arg1[%c69] : memref<77xf32, #tpu.memory_space<smem>>
    %235 = vector.broadcast %234 : f32 to vector<1x128xf32>
    %236 = arith.addf %233, %235 : vector<1x128xf32>
    %237 = math.tanh %236 : vector<1x128xf32>
    %c60 = arith.constant 60 : index
    %238 = memref.load %arg1[%c60] : memref<77xf32, #tpu.memory_space<smem>>
    %239 = vector.broadcast %238 : f32 to vector<1x128xf32>
    %240 = arith.mulf %142, %239 : vector<1x128xf32>
    %c61 = arith.constant 61 : index
    %241 = memref.load %arg1[%c61] : memref<77xf32, #tpu.memory_space<smem>>
    %242 = vector.broadcast %241 : f32 to vector<1x128xf32>
    %243 = arith.mulf %161, %242 : vector<1x128xf32>
    %c62 = arith.constant 62 : index
    %244 = memref.load %arg1[%c62] : memref<77xf32, #tpu.memory_space<smem>>
    %245 = vector.broadcast %244 : f32 to vector<1x128xf32>
    %246 = arith.mulf %180, %245 : vector<1x128xf32>
    %c63 = arith.constant 63 : index
    %247 = memref.load %arg1[%c63] : memref<77xf32, #tpu.memory_space<smem>>
    %248 = vector.broadcast %247 : f32 to vector<1x128xf32>
    %249 = arith.mulf %199, %248 : vector<1x128xf32>
    %250 = arith.addf %240, %243 : vector<1x128xf32>
    %251 = arith.addf %246, %249 : vector<1x128xf32>
    %252 = arith.addf %250, %251 : vector<1x128xf32>
    %c70 = arith.constant 70 : index
    %253 = memref.load %arg1[%c70] : memref<77xf32, #tpu.memory_space<smem>>
    %254 = vector.broadcast %253 : f32 to vector<1x128xf32>
    %255 = arith.addf %252, %254 : vector<1x128xf32>
    %256 = math.tanh %255 : vector<1x128xf32>
    %c64 = arith.constant 64 : index
    %257 = memref.load %arg1[%c64] : memref<77xf32, #tpu.memory_space<smem>>
    %258 = vector.broadcast %257 : f32 to vector<1x128xf32>
    %259 = arith.mulf %142, %258 : vector<1x128xf32>
    %c65 = arith.constant 65 : index
    %260 = memref.load %arg1[%c65] : memref<77xf32, #tpu.memory_space<smem>>
    %261 = vector.broadcast %260 : f32 to vector<1x128xf32>
    %262 = arith.mulf %161, %261 : vector<1x128xf32>
    %c66 = arith.constant 66 : index
    %263 = memref.load %arg1[%c66] : memref<77xf32, #tpu.memory_space<smem>>
    %264 = vector.broadcast %263 : f32 to vector<1x128xf32>
    %265 = arith.mulf %180, %264 : vector<1x128xf32>
    %c67 = arith.constant 67 : index
    %266 = memref.load %arg1[%c67] : memref<77xf32, #tpu.memory_space<smem>>
    %267 = vector.broadcast %266 : f32 to vector<1x128xf32>
    %268 = arith.mulf %199, %267 : vector<1x128xf32>
    %269 = arith.addf %259, %262 : vector<1x128xf32>
    %270 = arith.addf %265, %268 : vector<1x128xf32>
    %271 = arith.addf %269, %270 : vector<1x128xf32>
    %c71 = arith.constant 71 : index
    %272 = memref.load %arg1[%c71] : memref<77xf32, #tpu.memory_space<smem>>
    %273 = vector.broadcast %272 : f32 to vector<1x128xf32>
    %274 = arith.addf %271, %273 : vector<1x128xf32>
    %275 = math.tanh %274 : vector<1x128xf32>
    %c72 = arith.constant 72 : index
    %276 = memref.load %arg1[%c72] : memref<77xf32, #tpu.memory_space<smem>>
    %277 = vector.broadcast %276 : f32 to vector<1x128xf32>
    %278 = arith.mulf %218, %277 : vector<1x128xf32>
    %c73 = arith.constant 73 : index
    %279 = memref.load %arg1[%c73] : memref<77xf32, #tpu.memory_space<smem>>
    %280 = vector.broadcast %279 : f32 to vector<1x128xf32>
    %281 = arith.mulf %237, %280 : vector<1x128xf32>
    %c74 = arith.constant 74 : index
    %282 = memref.load %arg1[%c74] : memref<77xf32, #tpu.memory_space<smem>>
    %283 = vector.broadcast %282 : f32 to vector<1x128xf32>
    %284 = arith.mulf %256, %283 : vector<1x128xf32>
    %c75 = arith.constant 75 : index
    %285 = memref.load %arg1[%c75] : memref<77xf32, #tpu.memory_space<smem>>
    %286 = vector.broadcast %285 : f32 to vector<1x128xf32>
    %287 = arith.mulf %275, %286 : vector<1x128xf32>
    %288 = arith.addf %278, %281 : vector<1x128xf32>
    %289 = arith.addf %284, %287 : vector<1x128xf32>
    %290 = arith.addf %288, %289 : vector<1x128xf32>
    %c76 = arith.constant 76 : index
    %291 = memref.load %arg1[%c76] : memref<77xf32, #tpu.memory_space<smem>>
    %292 = vector.broadcast %291 : f32 to vector<1x128xf32>
    %293 = arith.addf %290, %292 : vector<1x128xf32>
    %c0_6 = arith.constant 0 : index
    %c0_7 = arith.constant 0 : index
    %c0_8 = arith.constant 0 : index
    %294 = vector.load %arg3[%c0_6, %c0_7, %c0_8] : memref<1x1x128xf32, #tpu.memory_space<vmem>>, vector<1x1x128xf32>
    %295 = vector.shape_cast %294 : vector<1x1x128xf32> to vector<1x128xf32>
    %296 = vector.shape_cast %293 : vector<1x128xf32> to vector<1x1x128xf32>
    tpu.vector_store %arg3[%c0_6, %c0_7, %c0_8], %296 {strides = array<i32>} : memref<1x1x128xf32, #tpu.memory_space<vmem>>, vector<1x1x128xf32>,
    return
  }
  func.func @transform_0(%arg0: i32) -> i32 {
    %c0_i32 = arith.constant 0 : i32
    %c0_i32_0 = arith.constant 0 : i32
    return %c0_i32 : i32
  }
  func.func @transform_1(%arg0: i32) -> (i32, i32, i32) {
    %c0_i32 = arith.constant 0 : i32
    %c0_i32_0 = arith.constant 0 : i32
    %c0_i32_1 = arith.constant 0 : i32
    return %c0_i32, %arg0, %c0_i32_0 : i32, i32, i32
  }
  func.func @transform_2(%arg0: i32) -> (i32, i32, i32) {
    %c0_i32 = arith.constant 0 : i32
    %c0_i32_0 = arith.constant 0 : i32
    %c0_i32_1 = arith.constant 0 : i32
    return %c0_i32, %arg0, %c0_i32_0 : i32, i32, i32
  }
}

</mosaic_0001>

<llo_original>
// kernel: tpu_custom_call.1
$region0: #{tpu_custom_call.1}
  #allocation0 [shape = 'u32[]', space=smem, size = 0x4, offset = 0x4, fixed_abs, tag = 'smem constant byte address 0x4 - core index']
  #allocation1 [shape = 'u32[144,128]{1,0:T(1,128)}', space=vmem, size = 0x12000, scoped, tag = 'internal scratch']
  %s0 = inlined_call_operand.hbm [shape: f32[77], index: 0, kind: input, shape index: {}]
  %s1 = inlined_call_operand.hbm [shape: f32[2,1,128], index: 1, kind: input, shape index: {}]
  %s2 = inlined_call_operand.hbm [shape: f32[1,1,128], index: 2, kind: output, shape index: {}]
  %s3 = sld [smem:[#allocation0]]
  $region26: #{tpu_custom_call.1} parent=0
    _
  %s5 = ssub.s32 1, %s3
  %s6 = scalar_select 0, %s5, %s3
  $region1: #{tpu_custom_call.1} parent=0
    #allocation2 [shape = 'u8[512]{0}', space=smem, size = 0x200, scoped, tag = 'input window, operand 0, single buffered']
    #allocation3 [shape = 's32[1]{0}', space=sflag, size = 0x4, scoped, tag = 'scoped memory for tpu_custom_call.1']
    #allocation4 [shape = 's32[1]{0}', space=sflag, size = 0x4, scoped, tag = 'scoped memory for tpu_custom_call.1']
    #allocation5 [shape = 's32[1]{0}', space=sflag, size = 0x4, scoped, tag = 'scoped memory for tpu_custom_call.1']
    #allocation6 [shape = 'u8[1024]{0}', space=vmem, size = 0x400, scoped, tag = 'input window, operand 1, single buffered']
    #allocation7 [shape = 'u8[512]{0}', space=vmem, size = 0x400, scoped, tag = 'output window, operand 0, single buffered']
    %7 = vsyncpa [#allocation5], 0
    %8 = vsyncpa [#allocation3], 0
    %9 = vsyncpa [#allocation4], 0
    // Predicated region
    $region2: #{tpu_custom_call.1} parent=1 // pred_check
      _
    $region3: #{tpu_custom_call.1} parent=1 // pred_check_branch
      %11 = sbr.rel (0) target = $region5
    $region4: #{tpu_custom_call.1} parent=1 // pred_region
      %s13 = ssub.s32 16, 16
      %14 = vsyncadd [#allocation5], %s13
      %17 = dma.hbm_to_smem %s0, 16, [#allocation2], [#allocation5]
    $region5: #{tpu_custom_call.1} parent=1 // pred_fallthru
      _
    // Predicated region
    $region6: #{tpu_custom_call.1} parent=1 // pred_check
      _
    $region7: #{tpu_custom_call.1} parent=1 // pred_check_branch
      %19 = sbr.rel (0) target = $region9
    $region8: #{tpu_custom_call.1} parent=1 // pred_region
      %s21 = ssub.s32 32, 32
      %22 = vsyncadd [#allocation3], %s21
      %s23 = sshll.u32 [#allocation6], 4
      %s24 = int_to_ptr.vmem [resolvable:$true] %s23
      %29 = dma.hbm_to_vmem [thread:$0]  %s1, 32, %s24, [#allocation3], 16, 16, 1
    $region9: #{tpu_custom_call.1} parent=1 // pred_fallthru
      _
    // Predicated region
    $region10: #{tpu_custom_call.1} parent=1 // pred_check
      _
    $region11: #{tpu_custom_call.1} parent=1 // pred_check_branch
      %31 = sbr.rel (0) target = $region13
    $region12: #{tpu_custom_call.1} parent=1 // pred_region
      %32 = dma.done [#allocation5], 16
    $region13: #{tpu_custom_call.1} parent=1 // pred_fallthru
      _
    // Predicated region
    $region14: #{tpu_custom_call.1} parent=1 // pred_check
      _
    $region15: #{tpu_custom_call.1} parent=1 // pred_check_branch
      %34 = sbr.rel (0) target = $region17
    $region16: #{tpu_custom_call.1} parent=1 // pred_region
      %35 = dma.done [#allocation3], 32
    $region17: #{tpu_custom_call.1} parent=1 // pred_fallthru
      _
    %36 = sfence
    %v37 = vld [vmem:[#allocation6] sm:$0x1]
    %s38 = scalar_lea.vmem [#allocation6], 1
    %v39 = vld [vmem:[%s38] sm:$0x1]
    %s40 = sld [smem:[#allocation2]]
    %v41 = vstv %s40
    %v42 = vmul.f32 %v37, %v41
    %s43 = sld [smem:[#allocation2 + $0x1]]
    %v44 = vstv %s43
    %v45 = vmul.f32 %v39, %v44
    %v46 = vadd.f32 %v42, %v45
    %s47 = sld [smem:[#allocation2 + $0x8]]
    %v48 = vstv %s47
    %v49 = vadd.f32 %v46, %v48
    %v50 = vtanh.pop %v49
    %s51 = sld [smem:[#allocation2 + $0x2]]
    %v52 = vstv %s51
    %v53 = vmul.f32 %v37, %v52
    %s54 = sld [smem:[#allocation2 + $0x3]]
    %v55 = vstv %s54
    %v56 = vmul.f32 %v39, %v55
    %v57 = vadd.f32 %v53, %v56
    %s58 = sld [smem:[#allocation2 + $0x9]]
    %v59 = vstv %s58
    %v60 = vadd.f32 %v57, %v59
    %v61 = vtanh.pop %v60
    %s62 = sld [smem:[#allocation2 + $0x4]]
    %v63 = vstv %s62
    %v64 = vmul.f32 %v37, %v63
    %s65 = sld [smem:[#allocation2 + $0x5]]
    %v66 = vstv %s65
    %v67 = vmul.f32 %v39, %v66
    %v68 = vadd.f32 %v64, %v67
    %s69 = sld [smem:[#allocation2 + $0xa]]
    %v70 = vstv %s69
    %v71 = vadd.f32 %v68, %v70
    %v72 = vtanh.pop %v71
    %s73 = sld [smem:[#allocation2 + $0x6]]
    %v74 = vstv %s73
    %v75 = vmul.f32 %v37, %v74
    %s76 = sld [smem:[#allocation2 + $0x7]]
    %v77 = vstv %s76
    %v78 = vmul.f32 %v39, %v77
    %v79 = vadd.f32 %v75, %v78
    %s80 = sld [smem:[#allocation2 + $0xb]]
    %v81 = vstv %s80
    %v82 = vadd.f32 %v79, %v81
    %v83 = vtanh.pop %v82
    %s84 = sld [smem:[#allocation2 + $0xc]]
    %v85 = vstv %s84
    %v86 = vmul.f32 %v50, %v85
    %s87 = sld [smem:[#allocation2 + $0xd]]
    %v88 = vstv %s87
    %v89 = vmul.f32 %v61, %v88
    %s90 = sld [smem:[#allocation2 + $0xe]]
    %v91 = vstv %s90
    %v92 = vmul.f32 %v72, %v91
    %s93 = sld [smem:[#allocation2 + $0xf]]
    %v94 = vstv %s93
    %v95 = vmul.f32 %v83, %v94
    %v96 = vadd.f32 %v86, %v89
    %v97 = vadd.f32 %v92, %v95
    %v98 = vadd.f32 %v96, %v97
    %s99 = sld [smem:[#allocation2 + $0x1c]]
    %v100 = vstv %s99
    %v101 = vadd.f32 %v98, %v100
    %v102 = vtanh.pop %v101
    %s103 = sld [smem:[#allocation2 + $0x10]]
    %v104 = vstv %s103
    %v105 = vmul.f32 %v50, %v104
    %s106 = sld [smem:[#allocation2 + $0x11]]
    %v107 = vstv %s106
    %v108 = vmul.f32 %v61, %v107
    %s109 = sld [smem:[#allocation2 + $0x12]]
    %v110 = vstv %s109
    %v111 = vmul.f32 %v72, %v110
    %s112 = sld [smem:[#allocation2 + $0x13]]
    %v113 = vstv %s112
    %v114 = vmul.f32 %v83, %v113
    %v115 = vadd.f32 %v105, %v108
    %v116 = vadd.f32 %v111, %v114
    %v117 = vadd.f32 %v115, %v116
    %s118 = sld [smem:[#allocation2 + $0x1d]]
    %v119 = vstv %s118
    %v120 = vadd.f32 %v117, %v119
    %v121 = vtanh.pop %v120
    %s122 = sld [smem:[#allocation2 + $0x14]]
    %v123 = vstv %s122
    %v124 = vmul.f32 %v50, %v123
    %s125 = sld [smem:[#allocation2 + $0x15]]
    %v126 = vstv %s125
    %v127 = vmul.f32 %v61, %v126
    %s128 = sld [smem:[#allocation2 + $0x16]]
    %v129 = vstv %s128
    %v130 = vmul.f32 %v72, %v129
    %s131 = sld [smem:[#allocation2 + $0x17]]
    %v132 = vstv %s131
    %v133 = vmul.f32 %v83, %v132
    %v134 = vadd.f32 %v124, %v127
    %v135 = vadd.f32 %v130, %v133
    %v136 = vadd.f32 %v134, %v135
    %s137 = sld [smem:[#allocation2 + $0x1e]]
    %v138 = vstv %s137
    %v139 = vadd.f32 %v136, %v138
    %v140 = vtanh.pop %v139
    %s141 = sld [smem:[#allocation2 + $0x18]]
    %v142 = vstv %s141
    %v143 = vmul.f32 %v50, %v142
    %s144 = sld [smem:[#allocation2 + $0x19]]
    %v145 = vstv %s144
    %v146 = vmul.f32 %v61, %v145
    %s147 = sld [smem:[#allocation2 + $0x1a]]
    %v148 = vstv %s147
    %v149 = vmul.f32 %v72, %v148
    %s150 = sld [smem:[#allocation2 + $0x1b]]
    %v151 = vstv %s150
    %v152 = vmul.f32 %v83, %v151
    %v153 = vadd.f32 %v143, %v146
    %v154 = vadd.f32 %v149, %v152
    %v155 = vadd.f32 %v153, %v154
    %s156 = sld [smem:[#allocation2 + $0x1f]]
    %v157 = vstv %s156
    %v158 = vadd.f32 %v155, %v157
    %v159 = vtanh.pop %v158
    %s160 = sld [smem:[#allocation2 + $0x20]]
    %v161 = vstv %s160
    %v162 = vmul.f32 %v102, %v161
    %s163 = sld [smem:[#allocation2 + $0x21]]
    %v164 = vstv %s163
    %v165 = vmul.f32 %v121, %v164
    %s166 = sld [smem:[#allocation2 + $0x22]]
    %v167 = vstv %s166
    %v168 = vmul.f32 %v140, %v167
    %s169 = sld [smem:[#allocation2 + $0x23]]
    %v170 = vstv %s169
    %v171 = vmul.f32 %v159, %v170
    %v172 = vadd.f32 %v162, %v165
    %v173 = vadd.f32 %v168, %v171
    %v174 = vadd.f32 %v172, %v173
    %s175 = sld [smem:[#allocation2 + $0x30]]
    %v176 = vstv %s175
    %v177 = vadd.f32 %v174, %v176
    %v178 = vtanh.pop %v177
    %s179 = sld [smem:[#allocation2 + $0x24]]
    %v180 = vstv %s179
    %v181 = vmul.f32 %v102, %v180
    %s182 = sld [smem:[#allocation2 + $0x25]]
    %v183 = vstv %s182
    %v184 = vmul.f32 %v121, %v183
    %s185 = sld [smem:[#allocation2 + $0x26]]
    %v186 = vstv %s185
    %v187 = vmul.f32 %v140, %v186
    %s188 = sld [smem:[#allocation2 + $0x27]]
    %v189 = vstv %s188
    %v190 = vmul.f32 %v159, %v189
    %v191 = vadd.f32 %v181, %v184
    %v192 = vadd.f32 %v187, %v190
    %v193 = vadd.f32 %v191, %v192
    %s194 = sld [smem:[#allocation2 + $0x31]]
    %v195 = vstv %s194
    %v196 = vadd.f32 %v193, %v195
    %v197 = vtanh.pop %v196
    %s198 = sld [smem:[#allocation2 + $0x28]]
    %v199 = vstv %s198
    %v200 = vmul.f32 %v102, %v199
    %s201 = sld [smem:[#allocation2 + $0x29]]
    %v202 = vstv %s201
    %v203 = vmul.f32 %v121, %v202
    %s204 = sld [smem:[#allocation2 + $0x2a]]
    %v205 = vstv %s204
    %v206 = vmul.f32 %v140, %v205
    %s207 = sld [smem:[#allocation2 + $0x2b]]
    %v208 = vstv %s207
    %v209 = vmul.f32 %v159, %v208
    %v210 = vadd.f32 %v200, %v203
    %v211 = vadd.f32 %v206, %v209
    %v212 = vadd.f32 %v210, %v211
    %s213 = sld [smem:[#allocation2 + $0x32]]
    %v214 = vstv %s213
    %v215 = vadd.f32 %v212, %v214
    %v216 = vtanh.pop %v215
    %s217 = sld [smem:[#allocation2 + $0x2c]]
    %v218 = vstv %s217
    %v219 = vmul.f32 %v102, %v218
    %s220 = sld [smem:[#allocation2 + $0x2d]]
    %v221 = vstv %s220
    %v222 = vmul.f32 %v121, %v221
    %s223 = sld [smem:[#allocation2 + $0x2e]]
    %v224 = vstv %s223
    %v225 = vmul.f32 %v140, %v224
    %s226 = sld [smem:[#allocation2 + $0x2f]]
    %v227 = vstv %s226
    %v228 = vmul.f32 %v159, %v227
    %v229 = vadd.f32 %v219, %v222
    %v230 = vadd.f32 %v225, %v228
    %v231 = vadd.f32 %v229, %v230
    %s232 = sld [smem:[#allocation2 + $0x33]]
    %v233 = vstv %s232
    %v234 = vadd.f32 %v231, %v233
    %v235 = vtanh.pop %v234
    %s236 = sld [smem:[#allocation2 + $0x34]]
    %v237 = vstv %s236
    %v238 = vmul.f32 %v178, %v237
    %s239 = sld [smem:[#allocation2 + $0x35]]
    %v240 = vstv %s239
    %v241 = vmul.f32 %v197, %v240
    %s242 = sld [smem:[#allocation2 + $0x36]]
    %v243 = vstv %s242
    %v244 = vmul.f32 %v216, %v243
    %s245 = sld [smem:[#allocation2 + $0x37]]
    %v246 = vstv %s245
    %v247 = vmul.f32 %v235, %v246
    %v248 = vadd.f32 %v238, %v241
    %v249 = vadd.f32 %v244, %v247
    %v250 = vadd.f32 %v248, %v249
    %s251 = sld [smem:[#allocation2 + $0x44]]
    %v252 = vstv %s251
    %v253 = vadd.f32 %v250, %v252
    %v254 = vtanh.pop %v253
    %s255 = sld [smem:[#allocation2 + $0x38]]
    %v256 = vstv %s255
    %v257 = vmul.f32 %v178, %v256
    %s258 = sld [smem:[#allocation2 + $0x39]]
    %v259 = vstv %s258
    %v260 = vmul.f32 %v197, %v259
    %s261 = sld [smem:[#allocation2 + $0x3a]]
    %v262 = vstv %s261
    %v263 = vmul.f32 %v216, %v262
    %s264 = sld [smem:[#allocation2 + $0x3b]]
    %v265 = vstv %s264
    %v266 = vmul.f32 %v235, %v265
    %v267 = vadd.f32 %v257, %v260
    %v268 = vadd.f32 %v263, %v266
    %v269 = vadd.f32 %v267, %v268
    %s270 = sld [smem:[#allocation2 + $0x45]]
    %v271 = vstv %s270
    %v272 = vadd.f32 %v269, %v271
    %v273 = vtanh.pop %v272
    %s274 = sld [smem:[#allocation2 + $0x3c]]
    %v275 = vstv %s274
    %v276 = vmul.f32 %v178, %v275
    %s277 = sld [smem:[#allocation2 + $0x3d]]
    %v278 = vstv %s277
    %v279 = vmul.f32 %v197, %v278
    %s280 = sld [smem:[#allocation2 + $0x3e]]
    %v281 = vstv %s280
    %v282 = vmul.f32 %v216, %v281
    %s283 = sld [smem:[#allocation2 + $0x3f]]
    %v284 = vstv %s283
    %v285 = vmul.f32 %v235, %v284
    %v286 = vadd.f32 %v276, %v279
    %v287 = vadd.f32 %v282, %v285
    %v288 = vadd.f32 %v286, %v287
    %s289 = sld [smem:[#allocation2 + $0x46]]
    %v290 = vstv %s289
    %v291 = vadd.f32 %v288, %v290
    %v292 = vtanh.pop %v291
    %s293 = sld [smem:[#allocation2 + $0x40]]
    %v294 = vstv %s293
    %v295 = vmul.f32 %v178, %v294
    %s296 = sld [smem:[#allocation2 + $0x41]]
    %v297 = vstv %s296
    %v298 = vmul.f32 %v197, %v297
    %s299 = sld [smem:[#allocation2 + $0x42]]
    %v300 = vstv %s299
    %v301 = vmul.f32 %v216, %v300
    %s302 = sld [smem:[#allocation2 + $0x43]]
    %v303 = vstv %s302
    %v304 = vmul.f32 %v235, %v303
    %v305 = vadd.f32 %v295, %v298
    %v306 = vadd.f32 %v301, %v304
    %v307 = vadd.f32 %v305, %v306
    %s308 = sld [smem:[#allocation2 + $0x47]]
    %v309 = vstv %s308
    %v310 = vadd.f32 %v307, %v309
    %v311 = vtanh.pop %v310
    %s312 = sld [smem:[#allocation2 + $0x48]]
    %v313 = vstv %s312
    %v314 = vmul.f32 %v254, %v313
    %s315 = sld [smem:[#allocation2 + $0x49]]
    %v316 = vstv %s315
    %v317 = vmul.f32 %v273, %v316
    %s318 = sld [smem:[#allocation2 + $0x4a]]
    %v319 = vstv %s318
    %v320 = vmul.f32 %v292, %v319
    %s321 = sld [smem:[#allocation2 + $0x4b]]
    %v322 = vstv %s321
    %v323 = vmul.f32 %v311, %v322
    %v324 = vadd.f32 %v314, %v317
    %v325 = vadd.f32 %v320, %v323
    %v326 = vadd.f32 %v324, %v325
    %s327 = sld [smem:[#allocation2 + $0x4c]]
    %v328 = vstv %s327
    %v329 = vadd.f32 %v326, %v328
    %330 = vst [vmem:[#allocation7] sm:$0x1] %v329
    // Predicated region
    $region18: #{tpu_custom_call.1} parent=1 // pred_check
      _
    $region19: #{tpu_custom_call.1} parent=1 // pred_check_branch
      %332 = sbr.rel (0) target = $region21
    $region20: #{tpu_custom_call.1} parent=1 // pred_region
      %s334 = ssub.s32 16, 16
      %335 = vsyncadd [#allocation4], %s334
      %s337 = sshll.u32 [#allocation7], 4
      %s338 = int_to_ptr.vmem [resolvable:$true] %s337
      %340 = dma.vmem_to_hbm [thread:$0]  %s338, 16, %s2, [#allocation4]
    $region21: #{tpu_custom_call.1} parent=1 // pred_fallthru
      _
    // Predicated region
    $region22: #{tpu_custom_call.1} parent=1 // pred_check
      _
    $region23: #{tpu_custom_call.1} parent=1 // pred_check_branch
      %342 = sbr.rel (0) target = $region25
    $region24: #{tpu_custom_call.1} parent=1 // pred_region
      %343 = dma.done [#allocation4], 16
    $region25: #{tpu_custom_call.1} parent=1 // pred_fallthru
      _
    %344 = vsyncpa [#allocation3], 1
    %345 = vsyncpa [#allocation4], 1
    %346 = vsyncpa [#allocation5], 1

</llo_original>
